<compile_context>
chip_gen: v6e
topology: v6e:2x2x1
jax: 0.10.0
libtpu: 0.0.40
codegen_flags: <defaults>
</compile_context>

<pallas_src>
import functools
import math

import jax
import jax.numpy as jnp
from jax.experimental import pallas as pl
from jax.experimental.pallas import tpu as pltpu


# ---------------------------------------------------------------------------
# Hardware / tiling helpers
# ---------------------------------------------------------------------------
def _sublane_pack(dtype) -> int:
    """Rows packed per f32 sublane for this dtype (8 f32, 16 bf16, 32 int8)."""
    itemsize = jnp.dtype(dtype).itemsize
    return {4: 8, 2: 16, 1: 32}.get(itemsize, 8)


def _vmem_budgets():
    """(per-tile byte budget, vmem_limit_bytes) chosen per TPU generation."""
    cap = None
    try:
        info = pltpu.get_tpu_info()
        cap = getattr(info, "vmem_capacity_bytes", None)
    except Exception:
        cap = None
    if cap is None:
        cap = 64 * 1024 * 1024                       # conservative: v7x VMEM/TC
    if cap >= 100 * 1024 * 1024:                     # v5e / v6e (128 MiB VMEM)
        return 8 * 1024 * 1024, 80 * 1024 * 1024
    return 4 * 1024 * 1024, 48 * 1024 * 1024         # v7x (64 MiB VMEM per TC)


def _fold_small_channels(C, N, dtype):
    """Factor k of N folded into the channel axis when C is below the sublane
    pack, so tiles/vregs are not mostly sublane padding.  k=1 means no fold."""
    pack = _sublane_pack(dtype)
    if C >= pack or pack % C != 0:
        return 1
    k = pack // C
    if k <= 1 or N % k != 0 or (N // k) < 128:
        return 1
    return k


def _select_tiles(C, N, itemsize, tile_budget):
    """Pick (tc, tn, grid) for a (C, N) elementwise kernel under a byte budget.
    tn is a multiple of 128 (or the full extent); for multi-MiB tensors the grid
    is guaranteed to have >= 2 steps so both v7x TensorCores get work."""
    tc = C if C <= 256 else 256
    tn_budget = max(128, (tile_budget // max(1, tc * itemsize)) // 128 * 128)
    tn = N if N <= tn_budget else tn_budget
    grid = (pl.cdiv(C, tc), pl.cdiv(N, tn))
    if grid == (1, 1) and C * N * itemsize >= (1 << 20) and N >= 256:
        half = -(-N // 2)                             # ceil(N / 2)
        tn_split = -(-half // 128) * 128              # round up to lane multiple
        if tn_split < N:
            tn = tn_split
            grid = (pl.cdiv(C, tc), pl.cdiv(N, tn))
    return tc, tn, grid


# ---------------------------------------------------------------------------
# One-time init: step = clip(2 * mean(|x|, dims!=0) / sqrt(num_bins), 1e-5, 1)
# ---------------------------------------------------------------------------
def _lsq_init_step_kernel(x_ref, step_ref, *, num_bins, n_total, tn, ragged_n):
    j = pl.program_id(1)

    @pl.when(j == 0)
    def _init():
        step_ref[...] = jnp.zeros_like(step_ref)

    x = jnp.abs(x_ref[...].astype(jnp.float32))       # f32 accumulation
    if ragged_n:                                      # static flag: only mask ragged tail
        col = jax.lax.broadcasted_iota(jnp.int32, x.shape, 1) + j * tn
        x = jnp.where(col < n_total, x, 0.0)
    step_ref[...] += jnp.sum(x, axis=1, keepdims=True)  # output block is resident over j

    @pl.when(j == pl.num_programs(1) - 1)
    def _finalize():
        mean_abs = step_ref[...] * (1.0 / n_total)
        step = 2.0 * mean_abs / math.sqrt(float(num_bins))
        step_ref[...] = jnp.clip(step, 1e-05, 1.0)


def lsq_init_step(x, bits):
    """Returns the per-channel initial step_size, shape (C,), f32."""
    C = x.shape[0]
    N = max(1, int(math.prod(x.shape[1:])))
    x2 = x.reshape(C, N)                              # native dtype, no upcast

    tile_budget, vmem_limit = _vmem_budgets()
    tc, tn, grid = _select_tiles(C, N, jnp.dtype(x2.dtype).itemsize, tile_budget)

    kernel = functools.partial(
        _lsq_init_step_kernel, num_bins=2 ** bits - 1, n_total=N, tn=tn,
        ragged_n=(N % tn != 0))
    step = pl.pallas_call(
        kernel,
        out_shape=jax.ShapeDtypeStruct((C, 1), jnp.float32),
        grid=grid,
        in_specs=[pl.BlockSpec((tc, tn), lambda i, j: (i, j))],
        out_specs=pl.BlockSpec((tc, 1), lambda i, j: (i, 0)),
        compiler_params=pltpu.CompilerParams(
            dimension_semantics=("parallel", "arbitrary"),
            vmem_limit_bytes=vmem_limit,
        ),
    )(x2)
    return step.reshape(C)


# ---------------------------------------------------------------------------
# Hot quantization kernel (purely elementwise + per-channel broadcast)
# ---------------------------------------------------------------------------
def _lsq_quant_kernel(s_ref, x_ref, out_ref, *, lo, hi):
    scale = s_ref[:, 0:1]                             # (tc, 1) f32, |step|+eps
    inv_scale = s_ref[:, 1:2]                         # (tc, 1) f32, exact 1/scale
    x = x_ref[...].astype(jnp.float32)                # (tc, tn) — f32 math everywhere
    # bias folded into clip bounds: out = round(clip(x/scale, bias, nb+bias)) * scale
    v = jnp.round(jnp.clip(x * inv_scale, lo, hi))
    out_ref[...] = (v * scale).astype(out_ref.dtype)


def lsq_perchannel_quantize(x, step_size, bits, *, donate_x=False):
    """Fused per-channel LSQ forward. Returns quantized tensor, same shape/dtype as x."""
    C = x.shape[0]
    N = max(1, int(math.prod(x.shape[1:])))

    num_bins = 2 ** bits - 1
    bias = -(num_bins // 2) - 1
    eps = 1e-07
    # Per-channel scalars computed once per call (one abs/add/reciprocal per channel),
    # packed into a single (C, 2) operand: [:, 0] = scale, [:, 1] = 1/scale.
    scale = jnp.abs(step_size.astype(jnp.float32)).reshape(C, 1) + eps
    s_pair = jnp.concatenate([scale, 1.0 / scale], axis=1)

    # Sublane folding for small C: view x as (C*k, N/k); repeat scale rows k times.
    k = _fold_small_channels(C, N, x.dtype)
    C_eff, N_eff = C * k, N // k
    x2 = x.reshape(C_eff, N_eff)                      # native dtype, no upcast
    if k > 1:
        s_pair = jnp.repeat(s_pair, k, axis=0)

    tile_budget, vmem_limit = _vmem_budgets()
    tc, tn, grid = _select_tiles(C_eff, N_eff, jnp.dtype(x2.dtype).itemsize,
                                 tile_budget)

    kernel = functools.partial(
        _lsq_quant_kernel, lo=float(bias), hi=float(num_bins + bias))
    out = pl.pallas_call(
        kernel,
        out_shape=jax.ShapeDtypeStruct((C_eff, N_eff), x2.dtype),   # native dtype out
        grid=grid,
        in_specs=[
            pl.BlockSpec((tc, 2), lambda i, j: (i, 0)),   # packed scale / 1/scale
            pl.BlockSpec((tc, tn), lambda i, j: (i, j)),  # x tile
        ],
        out_specs=pl.BlockSpec((tc, tn), lambda i, j: (i, j)),
        input_output_aliases=({1: 0} if donate_x else {}),
        compiler_params=pltpu.CompilerParams(
            dimension_semantics=("parallel", "parallel"),  # shards across v7x's 2 TCs
            vmem_limit_bytes=vmem_limit,
        ),
    )(s_pair, x2)
    return out.reshape(x.shape)


# ---------------------------------------------------------------------------
# Module wrapper (forward only, mirrors the PyTorch LSQPerChannel)
# ---------------------------------------------------------------------------
class LSQPerChannel:
    def __init__(self, num_channels, bits):
        self.bits = bits
        self.step_size = jnp.ones((num_channels,), dtype=jnp.float32)
        self.initialized = False
        self.enable_lsq = True

    def __call__(self, x):
        if not self.enable_lsq:
            return x
        if not self.initialized:
            # one-time init, gated in Python (trace-time specialization):
            self.step_size = lsq_init_step(x, self.bits)
            self.initialized = True
        return lsq_perchannel_quantize(x, self.step_size, self.bits)


# ---------------------------------------------------------------------------
# Plain-JAX references
# ---------------------------------------------------------------------------
def _reference_quantize(x, step_size, bits):
    """Reference of lsq_quantize_perchannel.forward, expressed exactly as the
    kernel computes it: x * (1/scale) with the precomputed reciprocal (<=1 ULP
    vs torch's divide) and the bias folded into the clip bounds (round ties can
    differ from torch at exact .5 boundaries; measure-zero)."""
    num_bins = 2 ** bits - 1
    bias = -(num_bins // 2) - 1
    scale = jnp.abs(step_size.astype(jnp.float32)).reshape(-1, 1, 1, 1) + 1e-07
    inv_scale = 1.0 / scale
    xf = x.astype(jnp.float32)
    v = jnp.round(jnp.clip(xf * inv_scale, float(bias), float(num_bins + bias)))
    return (v * scale).astype(x.dtype)


def _reference_init_step(x, bits):
    num_bins = 2 ** bits - 1
    abs_mean = jnp.mean(jnp.abs(x.astype(jnp.float32)), axis=(1, 2, 3))
    return jnp.clip(2.0 * abs_mean / math.sqrt(float(num_bins)), 1e-05, 1.0)


# ---------------------------------------------------------------------------
# Test
# ---------------------------------------------------------------------------
if __name__ == "__main__":
    key = jax.random.PRNGKey(0)
    C, D1, D2, D3 = 4, 4, 16, 16             # per-channel axis = dim 0
    bits = 4
    x = jax.random.normal(key, (C, D1, D2, D3), dtype=jnp.float32)

    module = LSQPerChannel(num_channels=C, bits=bits)
    y1 = jax.block_until_ready(module(x))    # first call: init kernel + quant kernel
    y2 = jax.block_until_ready(module(x))    # steady state: quant kernel only

    # Check the one-time step-size initialization (reduction kernel).
    step_ref = _reference_init_step(x, bits)
    assert module.step_size.shape == (C,)
    assert float(jnp.max(jnp.abs(module.step_size - step_ref))) < 1e-5

    # Check the quantization forward (module's own step isolates the quant math).
    y_ref = _reference_quantize(x, module.step_size, bits)
    assert y1.shape == x.shape and y1.dtype == x.dtype
    assert float(jnp.max(jnp.abs(y1 - y_ref))) < 1e-5
    assert float(jnp.max(jnp.abs(y2 - y_ref))) < 1e-5

    # Native-dtype path: bf16 in HBM, f32 math in-kernel, bf16 out (exercises the
    # sublane-folding path: C=4 < 16 -> folded to (16, N/4)).
    xb = x.astype(jnp.bfloat16)
    mb = LSQPerChannel(num_channels=C, bits=bits)
    yb = jax.block_until_ready(mb(xb))
    yb_ref = _reference_quantize(xb, mb.step_size, bits)
    assert yb.shape == xb.shape and yb.dtype == jnp.bfloat16
    assert float(jnp.max(jnp.abs(yb.astype(jnp.float32)
                                 - yb_ref.astype(jnp.float32)))) < 1e-2

    print("KERNEL_OK")
</pallas_src>

<mosaic_0001>
module attributes {stable_mosaic.version = 11 : i64} {
  func.func @_lsq_init_step_kernel(%arg0: i32, %arg1: i32, %arg2: memref<4x1024xf32, #tpu.memory_space<vmem>>, %arg3: memref<4x1xf32, #tpu.memory_space<vmem>>) attributes {dimension_semantics = [#tpu.dimension_semantics<parallel>, #tpu.dimension_semantics<arbitrary>], iteration_bounds = array<i64: 1, 1>, scalar_prefetch = 0 : i64, scratch_operands = 0 : i64, tpu.core_type = #tpu.core_type<tc>, window_params = [{transform_indices = @transform_0, window_bounds = array<i64: 4, 1024>}, {transform_indices = @transform_1, window_bounds = array<i64: 4, 1>}]} {
    %c0_i32 = arith.constant 0 : i32
    %0 = arith.cmpi eq, %arg1, %c0_i32 : i32
    %1 = arith.extui %0 : i1 to i32
    %c0_i32_0 = arith.constant 0 : i32
    %2 = arith.cmpi ne, %1, %c0_i32_0 : i32
    scf.if %2 {
      %cst_8 = arith.constant 0.000000e+00 : f32
      %13 = vector.broadcast %cst_8 : f32 to vector<4x1xf32>
      %c0_9 = arith.constant 0 : index
      %c0_10 = arith.constant 0 : index
      %14 = vector.load %arg3[%c0_9, %c0_10] : memref<4x1xf32, #tpu.memory_space<vmem>>, vector<4x1xf32>
      tpu.vector_store %arg3[%c0_9, %c0_10], %13 {strides = array<i32>} : memref<4x1xf32, #tpu.memory_space<vmem>>, vector<4x1xf32>,
    } else {
    }
    %c0 = arith.constant 0 : index
    %c0_1 = arith.constant 0 : index
    %3 = vector.load %arg2[%c0, %c0_1] : memref<4x1024xf32, #tpu.memory_space<vmem>>, vector<4x1024xf32>
    %4 = math.absf %3 : vector<4x1024xf32>
    %c0_2 = arith.constant 0 : index
    %c0_3 = arith.constant 0 : index
    %5 = vector.load %arg3[%c0_2, %c0_3] : memref<4x1xf32, #tpu.memory_space<vmem>>, vector<4x1xf32>
    %cst = arith.constant dense<0.000000e+00> : vector<4xf32>
    %6 = vector.multi_reduction <add>, %4, %cst [1] : vector<4x1024xf32> to vector<4xf32>
    %7 = vector.shape_cast %6 : vector<4xf32> to vector<4x1xf32>
    %8 = arith.addf %5, %7 : vector<4x1xf32>
    %c0_4 = arith.constant 0 : index
    %c0_5 = arith.constant 0 : index
    %9 = vector.load %arg3[%c0_4, %c0_5] : memref<4x1xf32, #tpu.memory_space<vmem>>, vector<4x1xf32>
    tpu.vector_store %arg3[%c0_4, %c0_5], %8 {strides = array<i32>} : memref<4x1xf32, #tpu.memory_space<vmem>>, vector<4x1xf32>,
    %c0_i32_6 = arith.constant 0 : i32
    %10 = arith.cmpi eq, %arg1, %c0_i32_6 : i32
    %11 = arith.extui %10 : i1 to i32
    %c0_i32_7 = arith.constant 0 : i32
    %12 = arith.cmpi ne, %11, %c0_i32_7 : i32
    scf.if %12 {
      %c0_8 = arith.constant 0 : index
      %c0_9 = arith.constant 0 : index
      %13 = vector.load %arg3[%c0_8, %c0_9] : memref<4x1xf32, #tpu.memory_space<vmem>>, vector<4x1xf32>
      %cst_10 = arith.constant 9.765625E-4 : f32
      %14 = vector.broadcast %cst_10 : f32 to vector<4x1xf32>
      %15 = arith.mulf %13, %14 : vector<4x1xf32>
      %cst_11 = arith.constant 2.000000e+00 : f32
      %16 = vector.broadcast %cst_11 : f32 to vector<4x1xf32>
      %17 = arith.mulf %16, %15 : vector<4x1xf32>
      %cst_12 = arith.constant 3.87298346 : f32
      %18 = vector.broadcast %cst_12 : f32 to vector<4x1xf32>
      %19 = arith.divf %17, %18 : vector<4x1xf32>
      %cst_13 = arith.constant 9.99999974E-6 : f32
      %cst_14 = arith.constant 1.000000e+00 : f32
      %20 = vector.broadcast %cst_13 : f32 to vector<4x1xf32>
      %21 = arith.maximumf %20, %19 : vector<4x1xf32>
      %22 = vector.broadcast %cst_14 : f32 to vector<4x1xf32>
      %23 = arith.minimumf %22, %21 : vector<4x1xf32>
      %c0_15 = arith.constant 0 : index
      %c0_16 = arith.constant 0 : index
      %24 = vector.load %arg3[%c0_15, %c0_16] : memref<4x1xf32, #tpu.memory_space<vmem>>, vector<4x1xf32>
      tpu.vector_store %arg3[%c0_15, %c0_16], %23 {strides = array<i32>} : memref<4x1xf32, #tpu.memory_space<vmem>>, vector<4x1xf32>,
    } else {
    }
    return
  }
  func.func @transform_0(%arg0: i32, %arg1: i32) -> (i32, i32) {
    %c0_i32 = arith.constant 0 : i32
    return %arg0, %arg1 : i32, i32
  }
  func.func @transform_1(%arg0: i32, %arg1: i32) -> (i32, i32) {
    %c0_i32 = arith.constant 0 : i32
    %c0_i32_0 = arith.constant 0 : i32
    return %arg0, %c0_i32 : i32, i32
  }
}

</mosaic_0001>

<llo_original>
// kernel: tpu_custom_call.1
$region0: #{tpu_custom_call.1}
  #allocation0 [shape = 'u32[]', space=smem, size = 0x4, offset = 0x4, fixed_abs, tag = 'smem constant byte address 0x4 - core index']
  #allocation1 [shape = 'u32[144,128]{1,0:T(1,128)}', space=vmem, size = 0x12000, scoped, tag = 'internal scratch']
  %s0 = inlined_call_operand.hbm [shape: f32[4,1024], index: 0, kind: input, shape index: {}]
  %s1 = inlined_call_operand.vmem [shape: f32[4,1], index: 1, kind: output, shape index: {}]
  %s2 = sld [smem:[#allocation0]]
  $region26: #{tpu_custom_call.1} parent=0
    _
  %s4 = ssub.s32 1, %s2
  %s5 = scalar_select 0, %s4, %s2
  $region1: #{tpu_custom_call.1} parent=0
    #allocation2 [shape = 'u8[16384]{0}', space=vmem, size = 0x4000, scoped, tag = 'input window, operand 0, single buffered']
    #allocation3 [shape = 's32[1]{0}', space=sflag, size = 0x4, scoped, tag = 'scoped memory for tpu_custom_call.1']
    %6 = vsyncpa [#allocation3], 0
    // Predicated region
    $region2: #{tpu_custom_call.1} parent=1 // pred_check
      _
    $region3: #{tpu_custom_call.1} parent=1 // pred_check_branch
      %8 = sbr.rel (0) target = $region5
    $region4: #{tpu_custom_call.1} parent=1 // pred_region
      %s10 = ssub.s32 512, 512
      %11 = vsyncadd [#allocation3], %s10
      %s13 = sshll.u32 [#allocation2], 4
      %s14 = int_to_ptr.vmem [resolvable:$true] %s13
      %16 = dma.hbm_to_vmem [thread:$0]  %s0, 512, %s14, [#allocation3]
    $region5: #{tpu_custom_call.1} parent=1 // pred_fallthru
      _
    // Predicated region
    $region6: #{tpu_custom_call.1} parent=1 // pred_check
      _
    $region7: #{tpu_custom_call.1} parent=1 // pred_check_branch
      %18 = sbr.rel (0) target = $region9
    $region8: #{tpu_custom_call.1} parent=1 // pred_region
      %19 = dma.done [#allocation3], 512
    $region9: #{tpu_custom_call.1} parent=1 // pred_fallthru
      _
    %p20 = scmp.eq.s32.totalorder 0, 0
    // Predicated region
    $region10: #{tpu_custom_call.1} parent=1 // pred_check
      %p21 = pneg %p20
    $region11: #{tpu_custom_call.1} parent=1 // pred_check_branch
      %23 = sbr.rel (%p21) target = $region13
    $region12: #{tpu_custom_call.1} parent=1 // pred_region
      %vm24 = vcmask 3072
      %25 = vst.msk [vmem:[%s1] sm:$0xf] %vm24, 0.0
    $region13: #{tpu_custom_call.1} parent=1 // pred_fallthru
      _
    %v26 = vld [vmem:[#allocation2] sm:$0xff]
    %v27 = vld [vmem:[#allocation2 + $0x8] sm:$0xff]
    %v28 = vld [vmem:[#allocation2 + $0x10] sm:$0xff]
    %v29 = vld [vmem:[#allocation2 + $0x18] sm:$0xff]
    %v30 = vand.u32 2147483647, %v26
    %v31 = vand.u32 2147483647, %v27
    %v32 = vand.u32 2147483647, %v28
    %v33 = vand.u32 2147483647, %v29
    %v34 = vld [vmem:[%s1] sm:$0xf]
    %v39 = vcombine.high %v30, %v30
    %v40 = vcombine.high %v31, %v31
    %v41 = vcombine.high %v32, %v32
    %v42 = vcombine.high %v33, %v33
    %vm47 = vcmask 1043456
    %v48 = vsel %vm47, %v30, 0.0
    %v49 = vsel %vm47, %v39, 0.0
    %v50 = vadd.f32 %v48, %v49
    %v51 = vsel %vm47, %v31, 0.0
    %v52 = vadd.f32 %v50, %v51
    %v53 = vsel %vm47, %v40, 0.0
    %v54 = vadd.f32 %v52, %v53
    %v55 = vsel %vm47, %v32, 0.0
    %v56 = vadd.f32 %v54, %v55
    %v57 = vsel %vm47, %v41, 0.0
    %v58 = vadd.f32 %v56, %v57
    %v59 = vsel %vm47, %v33, 0.0
    %v60 = vadd.f32 %v58, %v59
    %v61 = vsel %vm47, %v42, 0.0
    %v62 = vadd.f32 %v60, %v61
    %63 = vadd.xlane.f32.xlu0 %v62
    %v64 = vpop.xlane.xlu0 %63
    %v65 = vadd.f32 %v34, %v64
    %vm66 = vcmask 3072
    %67 = vst.msk [vmem:[%s1] sm:$0xf] %vm66, %v65
    // Predicated region
    $region14: #{tpu_custom_call.1} parent=1 // pred_check
      %p68 = pneg %p20
    $region15: #{tpu_custom_call.1} parent=1 // pred_check_branch
      %70 = sbr.rel (%p68) target = $region17
    $region16: #{tpu_custom_call.1} parent=1 // pred_region
      %v71 = vld [vmem:[%s1] sm:$0xf]
      %v72 = vmul.f32 %v71, 0.0009765625
      %v73 = vmul.f32 %v72, 2.0
      %v74 = vrcp.pop 3.8729835
      %v75 = vmul.f32 %v73, %v74
      %v76 = vmax.f32 %v75, 1e-05
      %v77 = vmin.f32 %v76, 1.0
      %78 = vst.msk [vmem:[%s1] sm:$0xf] %vm66, %v77
    $region17: #{tpu_custom_call.1} parent=1 // pred_fallthru
      _
    // Predicated region
    $region18: #{tpu_custom_call.1} parent=1 // pred_check
      _
    $region19: #{tpu_custom_call.1} parent=1 // pred_check_branch
      %80 = sbr.rel (0) target = $region21
    $region20: #{tpu_custom_call.1} parent=1 // pred_region
      _
    $region21: #{tpu_custom_call.1} parent=1 // pred_fallthru
      _
    // Predicated region
    $region22: #{tpu_custom_call.1} parent=1 // pred_check
      _
    $region23: #{tpu_custom_call.1} parent=1 // pred_check_branch
      %82 = sbr.rel (0) target = $region25
    $region24: #{tpu_custom_call.1} parent=1 // pred_region
      _
    $region25: #{tpu_custom_call.1} parent=1 // pred_fallthru
      _
    %83 = vsyncpa [#allocation3], 1

</llo_original>
